<compile_context>
chip_gen: v5e
topology: v5e:2x2
jax: 0.10.0
libtpu: 0.0.40
codegen_flags: <defaults>
</compile_context>

<pallas_src>
import functools

import jax
import jax.numpy as jnp
import numpy as np
from jax import lax
from jax.experimental import pallas as pl
from jax.experimental.pallas import tpu as pltpu


# --------------------------------- kernel -----------------------------------

def _resblock_kernel(x_ref, a1_ref, a2_ref, pm_ref, mtop_ref, mbot_ref,
                     g1_ref, b1_ref, g2_ref, b2_ref, out_ref, *, mm_dtype):
    eps = 1e-5
    f32 = jnp.float32
    nh, wc = x_ref.shape

    x = x_ref[...]            # (N*H, W*C) lane-dense slab (also the residual)
    pm2 = pm_ref[...]         # (2*W*C, 2*W*C) block-diag channel-mean matrix
    mtop = mtop_ref[...]      # (N*H, 1) 0/1 mask: zero where r % H == 0
    mbot = mbot_ref[...]      # (N*H, 1) 0/1 mask: zero where r % H == H-1

    def conv3x3(h, a_ref):
        # Vertical halo: sublane rotations (XLU slot) + boundary masks; the y
        # zero-padding is exactly the masked-out wrapped rows.
        h_up = pltpu.roll(h, 1, 0) * mtop          # rows y-1
        h_dn = pltpu.roll(h, nh - 1, 0) * mbot     # rows y+1
        # Horizontal taps + x zero-padding live in the block-banded weight;
        # K-concat so the MXU accumulates all three dy taps internally.
        hk = jnp.concatenate([h_up, h, h_dn], axis=1)          # (nh, 3*wc)
        return jnp.dot(hk.astype(mm_dtype), a_ref[...],
                       preferred_element_type=f32)             # (nh, wc) f32

    def bn_scale_shift(y, gamma, beta):
        # PyTorch training-mode batch stats (biased variance), kept lane-dense:
        # one sublane reduce each for sum(y) / sum(y*y), then ONE fused M=1
        # matmul against block_diag(pm, pm) that sums over the W lane groups,
        # folds the 1/(N*H*W) factor, and broadcasts back to all lanes.
        s_y = jnp.sum(y, axis=0, keepdims=True)                # (1, wc)
        s_yy = jnp.sum(y * y, axis=0, keepdims=True)           # (1, wc)
        stats = jnp.dot(jnp.concatenate([s_y, s_yy], axis=1), pm2,
                        preferred_element_type=f32)            # (1, 2*wc)
        mean = stats[:, :wc]
        # TODO(synk): E[y^2]-E[y]^2 cancels catastrophically when |mean|>>std;
        # switch to a centered second pass for deep residual stacks.
        var = stats[:, wc:] - mean * mean
        scale = lax.rsqrt(var + eps) * gamma                   # EUP rsqrt
        shift = beta - mean * scale
        return scale, shift

    # conv1 -> bn1 -> relu  (conv bias omitted: cancelled by BN mean-subtract)
    y1 = conv3x3(x, a1_ref)
    s1, t1 = bn_scale_shift(y1, g1_ref[...], b1_ref[...])
    h = jnp.maximum(y1 * s1 + t1, 0.0)

    # conv2 -> bn2 -> +residual -> relu
    y2 = conv3x3(h, a2_ref)
    s2, t2 = bn_scale_shift(y2, g2_ref[...], b2_ref[...])
    out_ref[...] = jnp.maximum(y2 * s2 + t2 + x, 0.0).astype(out_ref.dtype)


# ----------------------------- wrapper-side prep -----------------------------

def _conv_band_matrix(w_hwio, W):
    """HWIO (3,3,Cin,Cout) -> (3*W*Cin, W*Cout) stacked block-banded matrix.

    Block dy multiplies the rolled rows (y-1+dy); within block dy,
    A[xi*Cin+ci, xo*Cout+co] = w[dy, dx, ci, co] with dx = xi - xo + 1; the
    padding=1 columns simply have no band entry.
    """
    kh, kw, cin, cout = w_hwio.shape
    place = np.zeros((kw, W, W), np.float32)        # place[dx, x_in, x_out]
    for dx in range(kw):
        for xo in range(W):
            xi = xo + dx - 1
            if 0 <= xi < W:
                place[dx, xi, xo] = 1.0
    a = jnp.einsum("xpq,dxio->dpiqo", jnp.asarray(place),
                   w_hwio.astype(jnp.float32))
    return a.reshape(kh * W * cin, W * cout)


def _boundary_masks(N, H):
    """(N*H, 1) 0/1 masks zeroing the wrapped roll rows at image top/bottom."""
    r = np.arange(N * H)
    mtop = (r % H != 0).astype(np.float32).reshape(-1, 1)
    mbot = (r % H != H - 1).astype(np.float32).reshape(-1, 1)
    return jnp.asarray(mtop), jnp.asarray(mbot)


def _channel_stats_matrix(W, C, count):
    """block_diag(pm, pm) with pm[i, j] = 1/count if i % C == j % C else 0."""
    wc = W * C
    i = np.arange(wc)
    pm = (i[:, None] % C == i[None, :] % C).astype(np.float32) / float(count)
    pm2 = np.zeros((2 * wc, 2 * wc), np.float32)
    pm2[:wc, :wc] = pm
    pm2[wc:, wc:] = pm
    return jnp.asarray(pm2)


def prepare_params(params, N, H, W, *, mm_dtype=jnp.float32):
    """One-time conversion of PyTorch-style params into kernel operands.
    Reuse across calls / consecutive residual blocks kept in slab layout."""
    cout = params["w1"].shape[-1]
    mtop, mbot = _boundary_masks(N, H)

    def tile(v):  # per-channel (C,) -> lane-aligned (1, W*C)
        return jnp.tile(v.reshape(1, cout), (1, W)).astype(jnp.float32)

    return dict(
        a1=_conv_band_matrix(params["w1"], W).astype(mm_dtype),
        a2=_conv_band_matrix(params["w2"], W).astype(mm_dtype),
        pm2=_channel_stats_matrix(W, cout, N * H * W),
        mtop=mtop, mbot=mbot,
        g1=tile(params["gamma1"]), b1=tile(params["beta1"]),
        g2=tile(params["gamma2"]), b2=tile(params["beta2"]),
        mm_dtype=mm_dtype,
    )


def residual_block_vae_slab(x2d, prep):
    """x2d: (N*H, W*C) lane-dense activation slab; returns the same layout."""
    nh, wc = x2d.shape
    mm_dtype = prep["mm_dtype"]
    itemsize = jnp.dtype(mm_dtype).itemsize
    cost = pl.CostEstimate(
        flops=int(2 * (2 * nh * 3 * wc * wc)        # two K-stacked conv matmuls
                  + 2 * (2 * 2 * wc * 2 * wc)       # two fused BN-stat matmuls
                  + 16 * nh * wc),                  # masks / BN apply / relu
        transcendentals=int(2 * wc),
        bytes_accessed=int(4 * nh * wc * 2                    # x in + out
                           + 2 * itemsize * 3 * wc * wc       # a1, a2
                           + 4 * 4 * wc * wc                  # pm2
                           + 4 * (2 * nh + 4 * wc)))          # masks + BN params
    vmem = pl.BlockSpec(memory_space=pltpu.MemorySpace.VMEM)
    return pl.pallas_call(
        functools.partial(_resblock_kernel, mm_dtype=mm_dtype),
        out_shape=jax.ShapeDtypeStruct((nh, wc), jnp.float32),
        in_specs=[vmem] * 10,
        out_specs=vmem,
        cost_estimate=cost,
    )(x2d, prep["a1"], prep["a2"], prep["pm2"], prep["mtop"], prep["mbot"],
      prep["g1"], prep["b1"], prep["g2"], prep["b2"])


def residual_block_vae(x_nchw, params, *, mm_dtype=jnp.float32):
    """NCHW wrapper matching the PyTorch module.  For stacked VAE blocks,
    convert to the slab layout once and chain residual_block_vae_slab()."""
    N, C, H, W = x_nchw.shape
    cout = params["w1"].shape[-1]
    assert C == cout, "residual add requires in_channels == out_channels"
    prep = prepare_params(params, N, H, W, mm_dtype=mm_dtype)
    x2d = jnp.transpose(x_nchw, (0, 2, 3, 1)).reshape(N * H, W * C)
    out2d = residual_block_vae_slab(x2d, prep)
    return jnp.transpose(out2d.reshape(N, H, W, cout), (0, 3, 1, 2))


# ------------------------------- reference ----------------------------------

def _reference(x_nchw, params):
    """Pure-JAX reference: conv(+bias) and training-mode BN, as in PyTorch."""
    eps = 1e-5
    x = jnp.transpose(x_nchw, (0, 2, 3, 1))

    def conv(h, w, b):
        y = lax.conv_general_dilated(
            h, w, window_strides=(1, 1), padding="SAME",
            dimension_numbers=("NHWC", "HWIO", "NHWC"))
        return y + b.reshape(1, 1, 1, -1)

    def bn(h, g, be):
        m = jnp.mean(h, axis=(0, 1, 2), keepdims=True)
        v = jnp.mean((h - m) ** 2, axis=(0, 1, 2), keepdims=True)
        return (h - m) * lax.rsqrt(v + eps) * g.reshape(1, 1, 1, -1) \
            + be.reshape(1, 1, 1, -1)

    out = jax.nn.relu(bn(conv(x, params["w1"], params["b1"]),
                         params["gamma1"], params["beta1"]))
    out = bn(conv(out, params["w2"], params["b2"]),
             params["gamma2"], params["beta2"])
    out = jax.nn.relu(out + x)
    return jnp.transpose(out, (0, 3, 1, 2))


def init_params(key, in_channels, out_channels):
    ks = jax.random.split(key, 8)
    fan1 = in_channels * 9
    fan2 = out_channels * 9
    w1_oihw = jax.random.uniform(ks[0], (out_channels, in_channels, 3, 3),
                                 jnp.float32, -1.0, 1.0) / np.sqrt(fan1)
    w2_oihw = jax.random.uniform(ks[1], (out_channels, out_channels, 3, 3),
                                 jnp.float32, -1.0, 1.0) / np.sqrt(fan2)
    return {
        "w1": jnp.transpose(w1_oihw, (2, 3, 1, 0)),          # HWIO
        "b1": jax.random.uniform(ks[2], (out_channels,), jnp.float32,
                                 -1.0, 1.0) / np.sqrt(fan1),
        "w2": jnp.transpose(w2_oihw, (2, 3, 1, 0)),          # HWIO
        "b2": jax.random.uniform(ks[3], (out_channels,), jnp.float32,
                                 -1.0, 1.0) / np.sqrt(fan2),
        "gamma1": 1.0 + 0.1 * jax.random.uniform(ks[4], (out_channels,),
                                                 jnp.float32),
        "beta1": 0.1 * jax.random.uniform(ks[5], (out_channels,), jnp.float32,
                                          -1.0, 1.0),
        "gamma2": 1.0 + 0.1 * jax.random.uniform(ks[6], (out_channels,),
                                                 jnp.float32),
        "beta2": 0.1 * jax.random.uniform(ks[7], (out_channels,), jnp.float32,
                                          -1.0, 1.0),
    }


if __name__ == "__main__":
    key = jax.random.PRNGKey(0)
    kx, kp = jax.random.split(key)

    # W*C = 128 lanes (fully lane-dense, unmasked 128-lane stores),
    # N*H = 32 sublanes -> perfectly (8,128)-aligned working set.
    N, C, H, W = 2, 8, 16, 16
    x = jax.random.normal(kx, (N, C, H, W), jnp.float32)
    params = init_params(kp, C, C)

    ref = jax.block_until_ready(_reference(x, params))

    # f32 matmul-input path: strict correctness check.
    out = jax.block_until_ready(residual_block_vae(x, params))
    assert out.shape == (N, C, H, W)
    np.testing.assert_allclose(np.asarray(out), np.asarray(ref),
                               rtol=1e-3, atol=1e-3)

    # bf16 matmul-input path (v6e/v7x fast path; accumulation stays f32).
    out_bf16 = jax.block_until_ready(
        residual_block_vae(x, params, mm_dtype=jnp.bfloat16))
    np.testing.assert_allclose(np.asarray(out_bf16), np.asarray(ref),
                               rtol=5e-2, atol=5e-2)

    print("KERNEL_OK")
</pallas_src>

<mosaic_0001>
module attributes {stable_mosaic.version = 11 : i64} {
  func.func @_resblock_kernel(%arg0: memref<32x128xf32, #tpu.memory_space<vmem>>, %arg1: memref<384x128xf32, #tpu.memory_space<vmem>>, %arg2: memref<384x128xf32, #tpu.memory_space<vmem>>, %arg3: memref<256x256xf32, #tpu.memory_space<vmem>>, %arg4: memref<32x1xf32, #tpu.memory_space<vmem>>, %arg5: memref<32x1xf32, #tpu.memory_space<vmem>>, %arg6: memref<1x128xf32, #tpu.memory_space<vmem>>, %arg7: memref<1x128xf32, #tpu.memory_space<vmem>>, %arg8: memref<1x128xf32, #tpu.memory_space<vmem>>, %arg9: memref<1x128xf32, #tpu.memory_space<vmem>>, %arg10: memref<32x128xf32, #tpu.memory_space<vmem>>) attributes {dimension_semantics = [], scalar_prefetch = 0 : i64, scratch_operands = 0 : i64, tpu.core_type = #tpu.core_type<tc>} {
    %c0 = arith.constant 0 : index
    %c0_0 = arith.constant 0 : index
    %0 = vector.load %arg0[%c0, %c0_0] : memref<32x128xf32, #tpu.memory_space<vmem>>, vector<32x128xf32>
    %c0_1 = arith.constant 0 : index
    %c0_2 = arith.constant 0 : index
    %1 = vector.load %arg3[%c0_1, %c0_2] : memref<256x256xf32, #tpu.memory_space<vmem>>, vector<256x256xf32>
    %c0_3 = arith.constant 0 : index
    %c0_4 = arith.constant 0 : index
    %2 = vector.load %arg4[%c0_3, %c0_4] : memref<32x1xf32, #tpu.memory_space<vmem>>, vector<32x1xf32>
    %c0_5 = arith.constant 0 : index
    %c0_6 = arith.constant 0 : index
    %3 = vector.load %arg5[%c0_5, %c0_6] : memref<32x1xf32, #tpu.memory_space<vmem>>, vector<32x1xf32>
    %c1_i32 = arith.constant 1 : i32
    %4 = tpu.dynamic_rotate %0 by %c1_i32 dim 0 : vector<32x128xf32>, i32 -> vector<32x128xf32>
    %5 = vector.broadcast %2 : vector<32x1xf32> to vector<32x128xf32>
    %6 = arith.mulf %4, %5 : vector<32x128xf32>
    %c31_i32 = arith.constant 31 : i32
    %7 = tpu.dynamic_rotate %0 by %c31_i32 dim 0 : vector<32x128xf32>, i32 -> vector<32x128xf32>
    %8 = vector.broadcast %3 : vector<32x1xf32> to vector<32x128xf32>
    %9 = arith.mulf %7, %8 : vector<32x128xf32>
    %10 = tpu.concatenate %6, %0, %9 in 1 : vector<32x128xf32>, vector<32x128xf32>, vector<32x128xf32> -> vector<32x384xf32>
    %c0_7 = arith.constant 0 : index
    %c0_8 = arith.constant 0 : index
    %11 = vector.load %arg1[%c0_7, %c0_8] : memref<384x128xf32, #tpu.memory_space<vmem>>, vector<384x128xf32>
    %cst = arith.constant dense<0.000000e+00> : vector<32x128xf32>
    %12 = tpu.matmul %10, %11, %cst {dimension_numbers = #tpu.dot_dimension_numbers<[1], [0], [0], [1], [0, 0, 1, 1], [], []>} : vector<32x384xf32>, vector<384x128xf32>, vector<32x128xf32> -> vector<32x128xf32>
    %c0_9 = arith.constant 0 : index
    %c0_10 = arith.constant 0 : index
    %13 = vector.load %arg6[%c0_9, %c0_10] : memref<1x128xf32, #tpu.memory_space<vmem>>, vector<1x128xf32>
    %c0_11 = arith.constant 0 : index
    %c0_12 = arith.constant 0 : index
    %14 = vector.load %arg7[%c0_11, %c0_12] : memref<1x128xf32, #tpu.memory_space<vmem>>, vector<1x128xf32>
    %cst_13 = arith.constant dense<0.000000e+00> : vector<128xf32>
    %15 = vector.multi_reduction <add>, %12, %cst_13 [0] : vector<32x128xf32> to vector<128xf32>
    %16 = vector.shape_cast %15 : vector<128xf32> to vector<1x128xf32>
    %17 = arith.mulf %12, %12 : vector<32x128xf32>
    %cst_14 = arith.constant dense<0.000000e+00> : vector<128xf32>
    %18 = vector.multi_reduction <add>, %17, %cst_14 [0] : vector<32x128xf32> to vector<128xf32>
    %19 = vector.shape_cast %18 : vector<128xf32> to vector<1x128xf32>
    %20 = tpu.concatenate %16, %19 in 1 : vector<1x128xf32>, vector<1x128xf32> -> vector<1x256xf32>
    %cst_15 = arith.constant dense<0.000000e+00> : vector<1x256xf32>
    %21 = tpu.matmul %20, %1, %cst_15 {dimension_numbers = #tpu.dot_dimension_numbers<[1], [0], [0], [1], [0, 0, 1, 1], [], []>} : vector<1x256xf32>, vector<256x256xf32>, vector<1x256xf32> -> vector<1x256xf32>
    %22 = vector.extract_strided_slice %21 {offsets = [0, 0], sizes = [1, 128], strides = [1, 1]} : vector<1x256xf32> to vector<1x128xf32>
    %23 = vector.extract_strided_slice %21 {offsets = [0, 128], sizes = [1, 128], strides = [1, 1]} : vector<1x256xf32> to vector<1x128xf32>
    %24 = arith.mulf %22, %22 : vector<1x128xf32>
    %25 = arith.subf %23, %24 : vector<1x128xf32>
    %cst_16 = arith.constant 9.99999974E-6 : f32
    %26 = vector.broadcast %cst_16 : f32 to vector<1x128xf32>
    %27 = arith.addf %25, %26 : vector<1x128xf32>
    %28 = math.rsqrt %27 : vector<1x128xf32>
    %29 = arith.mulf %28, %13 : vector<1x128xf32>
    %30 = arith.mulf %22, %29 : vector<1x128xf32>
    %31 = arith.subf %14, %30 : vector<1x128xf32>
    %32 = vector.broadcast %29 : vector<1x128xf32> to vector<32x128xf32>
    %33 = arith.mulf %12, %32 : vector<32x128xf32>
    %34 = vector.broadcast %31 : vector<1x128xf32> to vector<32x128xf32>
    %35 = arith.addf %33, %34 : vector<32x128xf32>
    %cst_17 = arith.constant 0.000000e+00 : f32
    %36 = vector.broadcast %cst_17 : f32 to vector<32x128xf32>
    %37 = arith.maximumf %35, %36 : vector<32x128xf32>
    %c1_i32_18 = arith.constant 1 : i32
    %38 = tpu.dynamic_rotate %37 by %c1_i32_18 dim 0 : vector<32x128xf32>, i32 -> vector<32x128xf32>
    %39 = vector.broadcast %2 : vector<32x1xf32> to vector<32x128xf32>
    %40 = arith.mulf %38, %39 : vector<32x128xf32>
    %c31_i32_19 = arith.constant 31 : i32
    %41 = tpu.dynamic_rotate %37 by %c31_i32_19 dim 0 : vector<32x128xf32>, i32 -> vector<32x128xf32>
    %42 = vector.broadcast %3 : vector<32x1xf32> to vector<32x128xf32>
    %43 = arith.mulf %41, %42 : vector<32x128xf32>
    %44 = tpu.concatenate %40, %37, %43 in 1 : vector<32x128xf32>, vector<32x128xf32>, vector<32x128xf32> -> vector<32x384xf32>
    %c0_20 = arith.constant 0 : index
    %c0_21 = arith.constant 0 : index
    %45 = vector.load %arg2[%c0_20, %c0_21] : memref<384x128xf32, #tpu.memory_space<vmem>>, vector<384x128xf32>
    %cst_22 = arith.constant dense<0.000000e+00> : vector<32x128xf32>
    %46 = tpu.matmul %44, %45, %cst_22 {dimension_numbers = #tpu.dot_dimension_numbers<[1], [0], [0], [1], [0, 0, 1, 1], [], []>} : vector<32x384xf32>, vector<384x128xf32>, vector<32x128xf32> -> vector<32x128xf32>
    %c0_23 = arith.constant 0 : index
    %c0_24 = arith.constant 0 : index
    %47 = vector.load %arg8[%c0_23, %c0_24] : memref<1x128xf32, #tpu.memory_space<vmem>>, vector<1x128xf32>
    %c0_25 = arith.constant 0 : index
    %c0_26 = arith.constant 0 : index
    %48 = vector.load %arg9[%c0_25, %c0_26] : memref<1x128xf32, #tpu.memory_space<vmem>>, vector<1x128xf32>
    %cst_27 = arith.constant dense<0.000000e+00> : vector<128xf32>
    %49 = vector.multi_reduction <add>, %46, %cst_27 [0] : vector<32x128xf32> to vector<128xf32>
    %50 = vector.shape_cast %49 : vector<128xf32> to vector<1x128xf32>
    %51 = arith.mulf %46, %46 : vector<32x128xf32>
    %cst_28 = arith.constant dense<0.000000e+00> : vector<128xf32>
    %52 = vector.multi_reduction <add>, %51, %cst_28 [0] : vector<32x128xf32> to vector<128xf32>
    %53 = vector.shape_cast %52 : vector<128xf32> to vector<1x128xf32>
    %54 = tpu.concatenate %50, %53 in 1 : vector<1x128xf32>, vector<1x128xf32> -> vector<1x256xf32>
    %cst_29 = arith.constant dense<0.000000e+00> : vector<1x256xf32>
    %55 = tpu.matmul %54, %1, %cst_29 {dimension_numbers = #tpu.dot_dimension_numbers<[1], [0], [0], [1], [0, 0, 1, 1], [], []>} : vector<1x256xf32>, vector<256x256xf32>, vector<1x256xf32> -> vector<1x256xf32>
    %56 = vector.extract_strided_slice %55 {offsets = [0, 0], sizes = [1, 128], strides = [1, 1]} : vector<1x256xf32> to vector<1x128xf32>
    %57 = vector.extract_strided_slice %55 {offsets = [0, 128], sizes = [1, 128], strides = [1, 1]} : vector<1x256xf32> to vector<1x128xf32>
    %58 = arith.mulf %56, %56 : vector<1x128xf32>
    %59 = arith.subf %57, %58 : vector<1x128xf32>
    %cst_30 = arith.constant 9.99999974E-6 : f32
    %60 = vector.broadcast %cst_30 : f32 to vector<1x128xf32>
    %61 = arith.addf %59, %60 : vector<1x128xf32>
    %62 = math.rsqrt %61 : vector<1x128xf32>
    %63 = arith.mulf %62, %47 : vector<1x128xf32>
    %64 = arith.mulf %56, %63 : vector<1x128xf32>
    %65 = arith.subf %48, %64 : vector<1x128xf32>
    %66 = vector.broadcast %63 : vector<1x128xf32> to vector<32x128xf32>
    %67 = arith.mulf %46, %66 : vector<32x128xf32>
    %68 = vector.broadcast %65 : vector<1x128xf32> to vector<32x128xf32>
    %69 = arith.addf %67, %68 : vector<32x128xf32>
    %70 = arith.addf %69, %0 : vector<32x128xf32>
    %cst_31 = arith.constant 0.000000e+00 : f32
    %71 = vector.broadcast %cst_31 : f32 to vector<32x128xf32>
    %72 = arith.maximumf %70, %71 : vector<32x128xf32>
    %c0_32 = arith.constant 0 : index
    %c0_33 = arith.constant 0 : index
    %73 = vector.load %arg10[%c0_32, %c0_33] : memref<32x128xf32, #tpu.memory_space<vmem>>, vector<32x128xf32>
    tpu.vector_store %arg10[%c0_32, %c0_33], %72 {strides = array<i32>} : memref<32x128xf32, #tpu.memory_space<vmem>>, vector<32x128xf32>,
    return
  }
}

</mosaic_0001>

<llo_original>
// kernel: tpu_custom_call.1
$region0: #{tpu_custom_call.1}
  #allocation0 [shape = 'u32[]', space=smem, size = 0x4, offset = 0x4, fixed_abs, tag = 'smem constant byte address 0x4 - core index']
  #allocation1 [shape = 'u32[72,128]{1,0:T(1,128)}', space=vmem, size = 0x9000, scoped, tag = 'internal scratch']
  %s0 = inlined_call_operand.vmem [shape: f32[32,128], index: 0, kind: input, shape index: {}]
  %s1 = inlined_call_operand.hbm [shape: f32[384,128], index: 1, kind: input, shape index: {}]
  %s2 = inlined_call_operand.hbm [shape: f32[384,128], index: 2, kind: input, shape index: {}]
  %s3 = inlined_call_operand.hbm [shape: f32[256,256], index: 3, kind: input, shape index: {}]
  %s4 = inlined_call_operand.vmem [shape: f32[32,1], index: 4, kind: input, shape index: {}]
  %s5 = inlined_call_operand.vmem [shape: f32[32,1], index: 5, kind: input, shape index: {}]
  %s6 = inlined_call_operand.vmem [shape: f32[1,128], index: 6, kind: input, shape index: {}]
  %s7 = inlined_call_operand.vmem [shape: f32[1,128], index: 7, kind: input, shape index: {}]
  %s8 = inlined_call_operand.vmem [shape: f32[1,128], index: 8, kind: input, shape index: {}]
  %s9 = inlined_call_operand.vmem [shape: f32[1,128], index: 9, kind: input, shape index: {}]
  %s10 = inlined_call_operand.hbm [shape: f32[32,128], index: 10, kind: output, shape index: {}]
  %s11 = sld [smem:[#allocation0]]
  $region62: #{tpu_custom_call.1} parent=0
    _
  %s13 = ssub.s32 1, %s11
  %s14 = scalar_select 0, %s13, %s11
  $region1: #{tpu_custom_call.1} parent=0
    #allocation2 [shape = 'u8[196608]{0}', space=vmem, size = 0x30000, scoped, tag = 'input window, operand 1, single buffered']
    #allocation3 [shape = 's32[1]{0}', space=sflag, size = 0x4, scoped, tag = 'scoped memory for tpu_custom_call.1']
    #allocation4 [shape = 's32[1]{0}', space=sflag, size = 0x4, scoped, tag = 'scoped memory for tpu_custom_call.1']
    #allocation5 [shape = 'u8[196608]{0}', space=vmem, size = 0x30000, scoped, tag = 'input window, operand 2, single buffered']
    #allocation6 [shape = 's32[1]{0}', space=sflag, size = 0x4, scoped, tag = 'scoped memory for tpu_custom_call.1']
    #allocation7 [shape = 'u8[262144]{0}', space=vmem, size = 0x40000, scoped, tag = 'input window, operand 3, single buffered']
    #allocation8 [shape = 'u8[16384]{0}', space=vmem, size = 0x4000, scoped, tag = 'output window, operand 0, single buffered']
    %15 = vsyncpa [#allocation3], 0
    %16 = vsyncpa [#allocation6], 0
    %17 = vsyncpa [#allocation4], 0
    // Predicated region
    $region2: #{tpu_custom_call.1} parent=1 // pred_check
      _
    $region3: #{tpu_custom_call.1} parent=1 // pred_check_branch
      %19 = sbr.rel (0) target = $region5
    $region4: #{tpu_custom_call.1} parent=1 // pred_region
      _
    $region5: #{tpu_custom_call.1} parent=1 // pred_fallthru
      _
    // Predicated region
    $region6: #{tpu_custom_call.1} parent=1 // pred_check
      _
    $region7: #{tpu_custom_call.1} parent=1 // pred_check_branch
      %21 = sbr.rel (0) target = $region9
    $region8: #{tpu_custom_call.1} parent=1 // pred_region
      %23 = vsyncadd [#allocation3], 0
      %s24 = sshll.u32 %s1, 4
      %s25 = int_to_ptr.hbm [resolvable:$true] %s24
      %s26 = sshll.u32 [#allocation2], 4
      %s27 = int_to_ptr.vmem [resolvable:$true] %s26
      %32 = dma.hbm_to_vmem [thread:$0]  %s25, 6144, %s27, [#allocation3], 128, 128, 8
    $region9: #{tpu_custom_call.1} parent=1 // pred_fallthru
      _
    // Predicated region
    $region10: #{tpu_custom_call.1} parent=1 // pred_check
      _
    $region11: #{tpu_custom_call.1} parent=1 // pred_check_branch
      %34 = sbr.rel (0) target = $region13
    $region12: #{tpu_custom_call.1} parent=1 // pred_region
      %36 = vsyncadd [#allocation6], 0
      %s37 = sshll.u32 %s2, 4
      %s38 = int_to_ptr.hbm [resolvable:$true] %s37
      %s39 = sshll.u32 [#allocation5], 4
      %s40 = int_to_ptr.vmem [resolvable:$true] %s39
      %45 = dma.hbm_to_vmem [thread:$0]  %s38, 6144, %s40, [#allocation6], 128, 128, 8
    $region13: #{tpu_custom_call.1} parent=1 // pred_fallthru
      _
    // Predicated region
    $region14: #{tpu_custom_call.1} parent=1 // pred_check
      _
    $region15: #{tpu_custom_call.1} parent=1 // pred_check_branch
      %47 = sbr.rel (0) target = $region17
    $region16: #{tpu_custom_call.1} parent=1 // pred_region
      %49 = vsyncadd [#allocation6], 0
      %s50 = sshll.u32 %s3, 4
      %s51 = int_to_ptr.hbm [resolvable:$true] %s50
      %s52 = sshll.u32 [#allocation7], 4
      %s53 = int_to_ptr.vmem [resolvable:$true] %s52
      %58 = dma.hbm_to_vmem [thread:$0]  %s51, 8192, %s53, [#allocation6], 256, 256, 16
    $region17: #{tpu_custom_call.1} parent=1 // pred_fallthru
      _
    // Predicated region
    $region18: #{tpu_custom_call.1} parent=1 // pred_check
      _
    $region19: #{tpu_custom_call.1} parent=1 // pred_check_branch
      %60 = sbr.rel (0) target = $region21
    $region20: #{tpu_custom_call.1} parent=1 // pred_region
      _
    $region21: #{tpu_custom_call.1} parent=1 // pred_fallthru
      _
    // Predicated region
    $region22: #{tpu_custom_call.1} parent=1 // pred_check
      _
    $region23: #{tpu_custom_call.1} parent=1 // pred_check_branch
      %62 = sbr.rel (0) target = $region25
    $region24: #{tpu_custom_call.1} parent=1 // pred_region
      _
    $region25: #{tpu_custom_call.1} parent=1 // pred_fallthru
      _
    // Predicated region
    $region26: #{tpu_custom_call.1} parent=1 // pred_check
      _
    $region27: #{tpu_custom_call.1} parent=1 // pred_check_branch
      %64 = sbr.rel (0) target = $region29
    $region28: #{tpu_custom_call.1} parent=1 // pred_region
      _
    $region29: #{tpu_custom_call.1} parent=1 // pred_fallthru
      _
    // Predicated region
    $region30: #{tpu_custom_call.1} parent=1 // pred_check
      _
    $region31: #{tpu_custom_call.1} parent=1 // pred_check_branch
      %66 = sbr.rel (0) target = $region33
    $region32: #{tpu_custom_call.1} parent=1 // pred_region
      _
    $region33: #{tpu_custom_call.1} parent=1 // pred_fallthru
      _
    // Predicated region
    $region34: #{tpu_custom_call.1} parent=1 // pred_check
      _
    $region35: #{tpu_custom_call.1} parent=1 // pred_check_branch
      %68 = sbr.rel (0) target = $region37
    $region36: #{tpu_custom_call.1} parent=1 // pred_region
      _
    $region37: #{tpu_custom_call.1} parent=1 // pred_fallthru
      _
    // Predicated region
    $region38: #{tpu_custom_call.1} parent=1 // pred_check
      _
    $region39: #{tpu_custom_call.1} parent=1 // pred_check_branch
      %70 = sbr.rel (0) target = $region41
    $region40: #{tpu_custom_call.1} parent=1 // pred_region
      _
    $region41: #{tpu_custom_call.1} parent=1 // pred_fallthru
      _
    // Predicated region
    $region42: #{tpu_custom_call.1} parent=1 // pred_check
      _
    $region43: #{tpu_custom_call.1} parent=1 // pred_check_branch
      %72 = sbr.rel (0) target = $region45
    $region44: #{tpu_custom_call.1} parent=1 // pred_region
      %74 = dma.done [#allocation3], 6144
    $region45: #{tpu_custom_call.1} parent=1 // pred_fallthru
      _
    // Predicated region
    $region46: #{tpu_custom_call.1} parent=1 // pred_check
      _
    $region47: #{tpu_custom_call.1} parent=1 // pred_check_branch
      %76 = sbr.rel (0) target = $region49
    $region48: #{tpu_custom_call.1} parent=1 // pred_region
      %78 = dma.done [#allocation6], 6144
    $region49: #{tpu_custom_call.1} parent=1 // pred_fallthru
      _
    // Predicated region
    $region50: #{tpu_custom_call.1} parent=1 // pred_check
      _
    $region51: #{tpu_custom_call.1} parent=1 // pred_check_branch
      %80 = sbr.rel (0) target = $region53
    $region52: #{tpu_custom_call.1} parent=1 // pred_region
      %82 = dma.done [#allocation6], 8192
    $region53: #{tpu_custom_call.1} parent=1 // pred_fallthru
      _
    %v83 = vld [vmem:[%s0] sm:$0xff]
    %v84 = vld [vmem:[%s0 + $0x8] sm:$0xff]
    %v85 = vld [vmem:[%s0 + $0x10] sm:$0xff]
    %v86 = vld [vmem:[%s0 + $0x18] sm:$0xff]
    %v87 = vld [vmem:[#allocation7] sm:$0xff]
    %v88 = vld [vmem:[#allocation7 + $0x8] sm:$0xff]
    %v89 = vld [vmem:[#allocation7 + $0x10] sm:$0xff]
    %v90 = vld [vmem:[#allocation7 + $0x18] sm:$0xff]
    %v91 = vld [vmem:[#allocation7 + $0x20] sm:$0xff]
    %v92 = vld [vmem:[#allocation7 + $0x28] sm:$0xff]
    %v93 = vld [vmem:[#allocation7 + $0x30] sm:$0xff]
    %v94 = vld [vmem:[#allocation7 + $0x38] sm:$0xff]
    %v95 = vld [vmem:[#allocation7 + $0x40] sm:$0xff]
    %v96 = vld [vmem:[#allocation7 + $0x48] sm:$0xff]
    %v97 = vld [vmem:[#allocation7 + $0x50] sm:$0xff]
    %v98 = vld [vmem:[#allocation7 + $0x58] sm:$0xff]
    %v99 = vld [vmem:[#allocation7 + $0x60] sm:$0xff]
    %v100 = vld [vmem:[#allocation7 + $0x68] sm:$0xff]
    %v101 = vld [vmem:[#allocation7 + $0x70] sm:$0xff]
    %v102 = vld [vmem:[#allocation7 + $0x78] sm:$0xff]
    %v103 = vld [vmem:[#allocation7 + $0x80] sm:$0xff]
    %v104 = vld [vmem:[#allocation7 + $0x88] sm:$0xff]
    %v105 = vld [vmem:[#allocation7 + $0x90] sm:$0xff]
    %v106 = vld [vmem:[#allocation7 + $0x98] sm:$0xff]
    %v107 = vld [vmem:[#allocation7 + $0xa0] sm:$0xff]
    %v108 = vld [vmem:[#allocation7 + $0xa8] sm:$0xff]
    %v109 = vld [vmem:[#allocation7 + $0xb0] sm:$0xff]
    %v110 = vld [vmem:[#allocation7 + $0xb8] sm:$0xff]
    %v111 = vld [vmem:[#allocation7 + $0xc0] sm:$0xff]
    %v112 = vld [vmem:[#allocation7 + $0xc8] sm:$0xff]
    %v113 = vld [vmem:[#allocation7 + $0xd0] sm:$0xff]
    %v114 = vld [vmem:[#allocation7 + $0xd8] sm:$0xff]
    %v115 = vld [vmem:[#allocation7 + $0xe0] sm:$0xff]
    %v116 = vld [vmem:[#allocation7 + $0xe8] sm:$0xff]
    %v117 = vld [vmem:[#allocation7 + $0xf0] sm:$0xff]
    %v118 = vld [vmem:[#allocation7 + $0xf8] sm:$0xff]
    %v119 = vld [vmem:[#allocation7 + $0x100] sm:$0xff]
    %v120 = vld [vmem:[#allocation7 + $0x108] sm:$0xff]
    %v121 = vld [vmem:[#allocation7 + $0x110] sm:$0xff]
    %v122 = vld [vmem:[#allocation7 + $0x118] sm:$0xff]
    %v123 = vld [vmem:[#allocation7 + $0x120] sm:$0xff]
    %v124 = vld [vmem:[#allocation7 + $0x128] sm:$0xff]
    %v125 = vld [vmem:[#allocation7 + $0x130] sm:$0xff]
    %v126 = vld [vmem:[#allocation7 + $0x138] sm:$0xff]
    %v127 = vld [vmem:[#allocation7 + $0x140] sm:$0xff]
    %v128 = vld [vmem:[#allocation7 + $0x148] sm:$0xff]
    %v129 = vld [vmem:[#allocation7 + $0x150] sm:$0xff]
    %v130 = vld [vmem:[#allocation7 + $0x158] sm:$0xff]
    %v131 = vld [vmem:[#allocation7 + $0x160] sm:$0xff]
    %v132 = vld [vmem:[#allocation7 + $0x168] sm:$0xff]
    %v133 = vld [vmem:[#allocation7 + $0x170] sm:$0xff]
    %v134 = vld [vmem:[#allocation7 + $0x178] sm:$0xff]
    %v135 = vld [vmem:[#allocation7 + $0x180] sm:$0xff]
    %v136 = vld [vmem:[#allocation7 + $0x188] sm:$0xff]
    %v137 = vld [vmem:[#allocation7 + $0x190] sm:$0xff]
    %v138 = vld [vmem:[#allocation7 + $0x198] sm:$0xff]
    %v139 = vld [vmem:[#allocation7 + $0x1a0] sm:$0xff]
    %v140 = vld [vmem:[#allocation7 + $0x1a8] sm:$0xff]
    %v141 = vld [vmem:[#allocation7 + $0x1b0] sm:$0xff]
    %v142 = vld [vmem:[#allocation7 + $0x1b8] sm:$0xff]
    %v143 = vld [vmem:[#allocation7 + $0x1c0] sm:$0xff]
    %v144 = vld [vmem:[#allocation7 + $0x1c8] sm:$0xff]
    %v145 = vld [vmem:[#allocation7 + $0x1d0] sm:$0xff]
    %v146 = vld [vmem:[#allocation7 + $0x1d8] sm:$0xff]
    %v147 = vld [vmem:[#allocation7 + $0x1e0] sm:$0xff]
    %v148 = vld [vmem:[#allocation7 + $0x1e8] sm:$0xff]
    %v149 = vld [vmem:[#allocation7 + $0x1f0] sm:$0xff]
    %v150 = vld [vmem:[#allocation7 + $0x1f8] sm:$0xff]
    %v151 = vld [vmem:[%s4] sm:$0xff]
    %v152 = vld [vmem:[%s4 + $0x8] sm:$0xff]
    %v153 = vld [vmem:[%s4 + $0x10] sm:$0xff]
    %v154 = vld [vmem:[%s4 + $0x18] sm:$0xff]
    %v155 = vld [vmem:[%s5] sm:$0xff]
    %v156 = vld [vmem:[%s5 + $0x8] sm:$0xff]
    %v157 = vld [vmem:[%s5 + $0x10] sm:$0xff]
    %v158 = vld [vmem:[%s5 + $0x18] sm:$0xff]
    %v159 = vrot.slane %v83, 7
    %v160 = vrot.slane %v84, 7
    %v161 = vrot.slane %v85, 7
    %v162 = vrot.slane %v86, 7
    %v163 = vlaneseq
    %v164 = vshrl.u32 %v163, 7
    %vm165 = vcmp.lt.s32.totalorder %v164, 1
    %v166 = vsel %vm165, %v161, %v162
    %v167 = vsel %vm165, %v160, %v161
    %v168 = vsel %vm165, %v159, %v160
    %v169 = vsel %vm165, %v162, %v159
    %171 = vset.pattern.permute.xlu0 0
    %172 = vperm.xlu0 %171, %v151
    %v173 = vpop.permute.xlu0 %172
    %176 = vset.pattern.permute.xlu0 0
    %177 = vperm.xlu0 %176, %v152
    %v178 = vpop.permute.xlu0 %177
    %181 = vset.pattern.permute.xlu0 0
    %182 = vperm.xlu0 %181, %v153
    %v183 = vpop.permute.xlu0 %182
    %186 = vset.pattern.permute.xlu0 0
    %187 = vperm.xlu0 %186, %v154
    %v188 = vpop.permute.xlu0 %187
    %v190 = vmul.f32 %v169, %v173
    %v191 = vmul.f32 %v168, %v178
    %v192 = vmul.f32 %v167, %v183
    %v193 = vmul.f32 %v166, %v188
    %v194 = vrot.slane %v83, 1
    %v195 = vrot.slane %v84, 1
    %v196 = vrot.slane %v85, 1
    %v197 = vrot.slane %v86, 1
    %vm198 = vcmp.lt.s32.totalorder %v164, 7
    %v199 = vsel %vm198, %v196, %v197
    %v200 = vsel %vm198, %v195, %v196
    %v201 = vsel %vm198, %v194, %v195
    %v202 = vsel %vm198, %v197, %v194
    %204 = vset.pattern.permute.xlu0 0
    %205 = vperm.xlu0 %204, %v155
    %v206 = vpop.permute.xlu0 %205
    %209 = vset.pattern.permute.xlu0 0
    %210 = vperm.xlu0 %209, %v156
    %v211 = vpop.permute.xlu0 %210
    %214 = vset.pattern.permute.xlu0 0
    %215 = vperm.xlu0 %214, %v157
    %v216 = vpop.permute.xlu0 %215
    %219 = vset.pattern.permute.xlu0 0
    %220 = vperm.xlu0 %219, %v158
    %v221 = vpop.permute.xlu0 %220
    %v223 = vmul.f32 %v201, %v206
    %v224 = vmul.f32 %v200, %v211
    %v225 = vmul.f32 %v199, %v216
    %v226 = vmul.f32 %v202, %v221
    %v227 = vld [vmem:[#allocation2] sm:$0xff]
    %v228 = vld [vmem:[#allocation2 + $0x8] sm:$0xff]
    %v229 = vld [vmem:[#allocation2 + $0x10] sm:$0xff]
    %v230 = vld [vmem:[#allocation2 + $0x18] sm:$0xff]
    %v231 = vld [vmem:[#allocation2 + $0x20] sm:$0xff]
    %v232 = vld [vmem:[#allocation2 + $0x28] sm:$0xff]
    %v233 = vld [vmem:[#allocation2 + $0x30] sm:$0xff]
    %v234 = vld [vmem:[#allocation2 + $0x38] sm:$0xff]
    %v235 = vld [vmem:[#allocation2 + $0x40] sm:$0xff]
    %v236 = vld [vmem:[#allocation2 + $0x48] sm:$0xff]
    %v237 = vld [vmem:[#allocation2 + $0x50] sm:$0xff]
    %v238 = vld [vmem:[#allocation2 + $0x58] sm:$0xff]
    %v239 = vld [vmem:[#allocation2 + $0x60] sm:$0xff]
    %v240 = vld [vmem:[#allocation2 + $0x68] sm:$0xff]
    %v241 = vld [vmem:[#allocation2 + $0x70] sm:$0xff]
    %v242 = vld [vmem:[#allocation2 + $0x78] sm:$0xff]
    %v243 = vld [vmem:[#allocation2 + $0x80] sm:$0xff]
    %v244 = vld [vmem:[#allocation2 + $0x88] sm:$0xff]
    %v245 = vld [vmem:[#allocation2 + $0x90] sm:$0xff]
    %v246 = vld [vmem:[#allocation2 + $0x98] sm:$0xff]
    %v247 = vld [vmem:[#allocation2 + $0xa0] sm:$0xff]
    %v248 = vld [vmem:[#allocation2 + $0xa8] sm:$0xff]
    %v249 = vld [vmem:[#allocation2 + $0xb0] sm:$0xff]
    %v250 = vld [vmem:[#allocation2 + $0xb8] sm:$0xff]
    %v251 = vld [vmem:[#allocation2 + $0xc0] sm:$0xff]
    %v252 = vld [vmem:[#allocation2 + $0xc8] sm:$0xff]
    %v253 = vld [vmem:[#allocation2 + $0xd0] sm:$0xff]
    %v254 = vld [vmem:[#allocation2 + $0xd8] sm:$0xff]
    %v255 = vld [vmem:[#allocation2 + $0xe0] sm:$0xff]
    %v256 = vld [vmem:[#allocation2 + $0xe8] sm:$0xff]
    %v257 = vld [vmem:[#allocation2 + $0xf0] sm:$0xff]
    %v258 = vld [vmem:[#allocation2 + $0xf8] sm:$0xff]
    %v259 = vld [vmem:[#allocation2 + $0x100] sm:$0xff]
    %v260 = vld [vmem:[#allocation2 + $0x108] sm:$0xff]
    %v261 = vld [vmem:[#allocation2 + $0x110] sm:$0xff]
    %v262 = vld [vmem:[#allocation2 + $0x118] sm:$0xff]
    %v263 = vld [vmem:[#allocation2 + $0x120] sm:$0xff]
    %v264 = vld [vmem:[#allocation2 + $0x128] sm:$0xff]
    %v265 = vld [vmem:[#allocation2 + $0x130] sm:$0xff]
    %v266 = vld [vmem:[#allocation2 + $0x138] sm:$0xff]
    %v267 = vld [vmem:[#allocation2 + $0x140] sm:$0xff]
    %v268 = vld [vmem:[#allocation2 + $0x148] sm:$0xff]
    %v269 = vld [vmem:[#allocation2 + $0x150] sm:$0xff]
    %v270 = vld [vmem:[#allocation2 + $0x158] sm:$0xff]
    %v271 = vld [vmem:[#allocation2 + $0x160] sm:$0xff]
    %v272 = vld [vmem:[#allocation2 + $0x168] sm:$0xff]
    %v273 = vld [vmem:[#allocation2 + $0x170] sm:$0xff]
    %v274 = vld [vmem:[#allocation2 + $0x178] sm:$0xff]
    %275 = vmatpush.msra.mxu0 %v242
    %276 = vmatpush.msra.mxu0 %v241
    %277 = vmatpush.msra.mxu0 %v240
    %278 = vmatpush.msra.mxu0 %v239
    %279 = vmatpush.msra.mxu0 %v238
    %280 = vmatpush.msra.mxu0 %v237
    %281 = vmatpush.msra.mxu0 %v236
    %282 = vmatpush.msra.mxu0 %v235
    %283 = vmatpush.msra.mxu0 %v234
    %284 = vmatpush.msra.mxu0 %v233
    %285 = vmatpush.msra.mxu0 %v232
    %286 = vmatpush.msra.mxu0 %v231
    %287 = vmatpush.msra.mxu0 %v230
    %288 = vmatpush.msra.mxu0 %v229
    %289 = vmatpush.msra.mxu0 %v228
    %290 = vmatpush.msra.mxu0 %v227
    %291 = vmatmul.f32.gmra.mxu0 %v190
    %v292 = vpop.f32.mrf.mxu0
    %v293 = vadd.f32 0.0, %v292
    %294 = vmatmul.f32.gmra.mxu0 %v191
    %v295 = vpop.f32.mrf.mxu0
    %v296 = vadd.f32 0.0, %v295
    %297 = vmatmul.f32.gmra.mxu0 %v192
    %v298 = vpop.f32.mrf.mxu0
    %v299 = vadd.f32 0.0, %v298
    %300 = vmatmul.f32.gmra.mxu0 %v193
    %v301 = vpop.f32.mrf.mxu0
    %v302 = vadd.f32 0.0, %v301
    %303 = vdwg.mxu0
    %304 = vmatpush.msra.mxu0 %v258
    %305 = vmatpush.msra.mxu0 %v257
    %306 = vmatpush.msra.mxu0 %v256
    %307 = vmatpush.msra.mxu0 %v255
    %308 = vmatpush.msra.mxu0 %v254
    %309 = vmatpush.msra.mxu0 %v253
    %310 = vmatpush.msra.mxu0 %v252
    %311 = vmatpush.msra.mxu0 %v251
    %312 = vmatpush.msra.mxu0 %v250
    %313 = vmatpush.msra.mxu0 %v249
    %314 = vmatpush.msra.mxu0 %v248
    %315 = vmatpush.msra.mxu0 %v247
    %316 = vmatpush.msra.mxu0 %v246
    %317 = vmatpush.msra.mxu0 %v245
    %318 = vmatpush.msra.mxu0 %v244
    %319 = vmatpush.msra.mxu0 %v243
    %320 = vmatmul.f32.gmra.mxu0 %v83
    %v321 = vpop.f32.mrf.mxu0
    %v322 = vadd.f32 %v293, %v321
    %323 = vmatmul.f32.gmra.mxu0 %v84
    %v324 = vpop.f32.mrf.mxu0
    %v325 = vadd.f32 %v296, %v324
    %326 = vmatmul.f32.gmra.mxu0 %v85
    %v327 = vpop.f32.mrf.mxu0
    %v328 = vadd.f32 %v299, %v327
    %329 = vmatmul.f32.gmra.mxu0 %v86
    %v330 = vpop.f32.mrf.mxu0
    %v331 = vadd.f32 %v302, %v330
    %332 = vdwg.mxu0
    %333 = vmatpush.msra.mxu0 %v274
    %334 = vmatpush.msra.mxu0 %v273
    %335 = vmatpush.msra.mxu0 %v272
    %336 = vmatpush.msra.mxu0 %v271
    %337 = vmatpush.msra.mxu0 %v270
    %338 = vmatpush.msra.mxu0 %v269
    %339 = vmatpush.msra.mxu0 %v268
    %340 = vmatpush.msra.mxu0 %v267
    %341 = vmatpush.msra.mxu0 %v266
    %342 = vmatpush.msra.mxu0 %v265
    %343 = vmatpush.msra.mxu0 %v264
    %344 = vmatpush.msra.mxu0 %v263
    %345 = vmatpush.msra.mxu0 %v262
    %346 = vmatpush.msra.mxu0 %v261
    %347 = vmatpush.msra.mxu0 %v260
    %348 = vmatpush.msra.mxu0 %v259
    %349 = vmatmul.f32.gmra.mxu0 %v223
    %v350 = vpop.f32.mrf.mxu0
    %v351 = vadd.f32 %v322, %v350
    %352 = vmatmul.f32.gmra.mxu0 %v224
    %v353 = vpop.f32.mrf.mxu0
    %v354 = vadd.f32 %v325, %v353
    %355 = vmatmul.f32.gmra.mxu0 %v225
    %v356 = vpop.f32.mrf.mxu0
    %v357 = vadd.f32 %v328, %v356
    %358 = vmatmul.f32.gmra.mxu0 %v226
    %v359 = vpop.f32.mrf.mxu0
    %v360 = vadd.f32 %v331, %v359
    %361 = vdwg.mxu0
    %v362 = vld [vmem:[%s6] sm:$0x1]
    %v363 = vld [vmem:[%s7] sm:$0x1]
    %v364 = vadd.f32 %v351, %v354
    %v365 = vadd.f32 %v364, %v357
    %v366 = vadd.f32 %v365, %v360
    %v367 = vrot.slane %v366, 4
    %v368 = vadd.f32 %v366, %v367
    %v369 = vrot.slane %v368, 2
    %v370 = vadd.f32 %v368, %v369
    %v371 = vrot.slane %v370, 1
    %v372 = vadd.f32 %v370, %v371
    %v373 = vmul.f32 %v351, %v351
    %v374 = vmul.f32 %v354, %v354
    %v375 = vmul.f32 %v357, %v357
    %v376 = vmul.f32 %v360, %v360
    %v377 = vadd.f32 %v373, %v374
    %v378 = vadd.f32 %v377, %v375
    %v379 = vadd.f32 %v378, %v376
    %v380 = vrot.slane %v379, 4
    %v381 = vadd.f32 %v379, %v380
    %v382 = vrot.slane %v381, 2
    %v383 = vadd.f32 %v381, %v382
    %v384 = vrot.slane %v383, 1
    %v385 = vadd.f32 %v383, %v384
    %386 = vmatpush.msra.mxu0 %v117
    %387 = vmatpush.msra.mxu0 %v115
    %388 = vmatpush.msra.mxu0 %v113
    %389 = vmatpush.msra.mxu0 %v111
    %390 = vmatpush.msra.mxu0 %v109
    %391 = vmatpush.msra.mxu0 %v107
    %392 = vmatpush.msra.mxu0 %v105
    %393 = vmatpush.msra.mxu0 %v103
    %394 = vmatpush.msra.mxu0 %v101
    %395 = vmatpush.msra.mxu0 %v99
    %396 = vmatpush.msra.mxu0 %v97
    %397 = vmatpush.msra.mxu0 %v95
    %398 = vmatpush.msra.mxu0 %v93
    %399 = vmatpush.msra.mxu0 %v91
    %400 = vmatpush.msra.mxu0 %v89
    %401 = vmatpush.msra.mxu0 %v87
    %402 = vmatmul.f32.gmra.mxu0 %v372
    %v403 = vpop.f32.mrf.mxu0
    %v404 = vadd.f32 0.0, %v403
    %405 = vdwg.mxu0
    %406 = vmatpush.msra.mxu0 %v149
    %407 = vmatpush.msra.mxu0 %v147
    %408 = vmatpush.msra.mxu0 %v145
    %409 = vmatpush.msra.mxu0 %v143
    %410 = vmatpush.msra.mxu0 %v141
    %411 = vmatpush.msra.mxu0 %v139
    %412 = vmatpush.msra.mxu0 %v137
    %413 = vmatpush.msra.mxu0 %v135
    %414 = vmatpush.msra.mxu0 %v133
    %415 = vmatpush.msra.mxu0 %v131
    %416 = vmatpush.msra.mxu0 %v129
    %417 = vmatpush.msra.mxu0 %v127
    %418 = vmatpush.msra.mxu0 %v125
    %419 = vmatpush.msra.mxu0 %v123
    %420 = vmatpush.msra.mxu0 %v121
    %421 = vmatpush.msra.mxu0 %v119
    %422 = vmatmul.f32.gmra.mxu0 %v385
    %v423 = vpop.f32.mrf.mxu0
    %v424 = vadd.f32 %v404, %v423
    %425 = vdwg.mxu0
    %426 = vmatpush.msra.mxu0 %v118
    %427 = vmatpush.msra.mxu0 %v116
    %428 = vmatpush.msra.mxu0 %v114
    %429 = vmatpush.msra.mxu0 %v112
    %430 = vmatpush.msra.mxu0 %v110
    %431 = vmatpush.msra.mxu0 %v108
    %432 = vmatpush.msra.mxu0 %v106
    %433 = vmatpush.msra.mxu0 %v104
    %434 = vmatpush.msra.mxu0 %v102
    %435 = vmatpush.msra.mxu0 %v100
    %436 = vmatpush.msra.mxu0 %v98
    %437 = vmatpush.msra.mxu0 %v96
    %438 = vmatpush.msra.mxu0 %v94
    %439 = vmatpush.msra.mxu0 %v92
    %440 = vmatpush.msra.mxu0 %v90
    %441 = vmatpush.msra.mxu0 %v88
    %442 = vmatmul.f32.gmra.mxu0 %v372
    %v443 = vpop.f32.mrf.mxu0
    %v444 = vadd.f32 0.0, %v443
    %445 = vdwg.mxu0
    %446 = vmatpush.msra.mxu0 %v150
    %447 = vmatpush.msra.mxu0 %v148
    %448 = vmatpush.msra.mxu0 %v146
    %449 = vmatpush.msra.mxu0 %v144
    %450 = vmatpush.msra.mxu0 %v142
    %451 = vmatpush.msra.mxu0 %v140
    %452 = vmatpush.msra.mxu0 %v138
    %453 = vmatpush.msra.mxu0 %v136
    %454 = vmatpush.msra.mxu0 %v134
    %455 = vmatpush.msra.mxu0 %v132
    %456 = vmatpush.msra.mxu0 %v130
    %457 = vmatpush.msra.mxu0 %v128
    %458 = vmatpush.msra.mxu0 %v126
    %459 = vmatpush.msra.mxu0 %v124
    %460 = vmatpush.msra.mxu0 %v122
    %461 = vmatpush.msra.mxu0 %v120
    %462 = vmatmul.f32.gmra.mxu0 %v385
    %v463 = vpop.f32.mrf.mxu0
    %v464 = vadd.f32 %v444, %v463
    %465 = vdwg.mxu0
    %v466 = vmul.f32 %v424, %v424
    %v467 = vsub.f32 %v464, %v466
    %v468 = vadd.f32 %v467, 1e-05
    %v469 = vrsqrt.pop %v468
    %v470 = vmul.f32 %v469, %v468
    %v471 = vmul.f32 %v470, %v469
    %v472 = vmul.f32 0.5, %v471
    %v473 = vsub.f32 1.5, %v472
    %v474 = vmul.f32 %v469, %v473
    %vm475 = vweird.f32 %v468
    %vm476 = vweird.f32 %v469
    %vm477 = vmor %vm475, %vm476
    %v478 = vsel %vm477, %v469, %v474
    %v479 = vmul.f32 %v478, %v362
    %v480 = vmul.f32 %v424, %v479
    %v481 = vsub.f32 %v363, %v480
    %v482 = vperm.slane %v479, 0
    %v483 = vmul.f32 %v351, %v482
    %v484 = vmul.f32 %v354, %v482
    %v485 = vmul.f32 %v357, %v482
    %v486 = vmul.f32 %v360, %v482
    %v488 = vperm.slane %v481, 0
    %v490 = vadd.f32 %v483, %v488
    %v491 = vadd.f32 %v484, %v488
    %v492 = vadd.f32 %v485, %v488
    %v493 = vadd.f32 %v486, %v488
    %v494 = vmax.f32 %v490, 0.0
    %v495 = vmax.f32 %v491, 0.0
    %v496 = vmax.f32 %v492, 0.0
    %v497 = vmax.f32 %v493, 0.0
    %v498 = vrot.slane %v494, 7
    %v499 = vrot.slane %v495, 7
    %v500 = vrot.slane %v496, 7
    %v501 = vrot.slane %v497, 7
    %v502 = vsel %vm165, %v500, %v501
    %v503 = vsel %vm165, %v499, %v500
    %v504 = vsel %vm165, %v498, %v499
    %v505 = vsel %vm165, %v501, %v498
    %v506 = vmul.f32 %v505, %v173
    %v507 = vmul.f32 %v504, %v178
    %v508 = vmul.f32 %v503, %v183
    %v509 = vmul.f32 %v502, %v188
    %v510 = vrot.slane %v494, 1
    %v511 = vrot.slane %v495, 1
    %v512 = vrot.slane %v496, 1
    %v513 = vrot.slane %v497, 1
    %v514 = vsel %vm198, %v512, %v513
    %v515 = vsel %vm198, %v511, %v512
    %v516 = vsel %vm198, %v510, %v511
    %v517 = vsel %vm198, %v513, %v510
    %v518 = vmul.f32 %v516, %v206
    %v519 = vmul.f32 %v515, %v211
    %v520 = vmul.f32 %v514, %v216
    %v521 = vmul.f32 %v517, %v221
    %v522 = vld [vmem:[#allocation5] sm:$0xff]
    %v523 = vld [vmem:[#allocation5 + $0x8] sm:$0xff]
    %v524 = vld [vmem:[#allocation5 + $0x10] sm:$0xff]
    %v525 = vld [vmem:[#allocation5 + $0x18] sm:$0xff]
    %v526 = vld [vmem:[#allocation5 + $0x20] sm:$0xff]
    %v527 = vld [vmem:[#allocation5 + $0x28] sm:$0xff]
    %v528 = vld [vmem:[#allocation5 + $0x30] sm:$0xff]
    %v529 = vld [vmem:[#allocation5 + $0x38] sm:$0xff]
    %v530 = vld [vmem:[#allocation5 + $0x40] sm:$0xff]
    %v531 = vld [vmem:[#allocation5 + $0x48] sm:$0xff]
    %v532 = vld [vmem:[#allocation5 + $0x50] sm:$0xff]
    %v533 = vld [vmem:[#allocation5 + $0x58] sm:$0xff]
    %v534 = vld [vmem:[#allocation5 + $0x60] sm:$0xff]
    %v535 = vld [vmem:[#allocation5 + $0x68] sm:$0xff]
    %v536 = vld [vmem:[#allocation5 + $0x70] sm:$0xff]
    %v537 = vld [vmem:[#allocation5 + $0x78] sm:$0xff]
    %v538 = vld [vmem:[#allocation5 + $0x80] sm:$0xff]
    %v539 = vld [vmem:[#allocation5 + $0x88] sm:$0xff]
    %v540 = vld [vmem:[#allocation5 + $0x90] sm:$0xff]
    %v541 = vld [vmem:[#allocation5 + $0x98] sm:$0xff]
    %v542 = vld [vmem:[#allocation5 + $0xa0] sm:$0xff]
    %v543 = vld [vmem:[#allocation5 + $0xa8] sm:$0xff]
    %v544 = vld [vmem:[#allocation5 + $0xb0] sm:$0xff]
    %v545 = vld [vmem:[#allocation5 + $0xb8] sm:$0xff]
    %v546 = vld [vmem:[#allocation5 + $0xc0] sm:$0xff]
    %v547 = vld [vmem:[#allocation5 + $0xc8] sm:$0xff]
    %v548 = vld [vmem:[#allocation5 + $0xd0] sm:$0xff]
    %v549 = vld [vmem:[#allocation5 + $0xd8] sm:$0xff]
    %v550 = vld [vmem:[#allocation5 + $0xe0] sm:$0xff]
    %v551 = vld [vmem:[#allocation5 + $0xe8] sm:$0xff]
    %v552 = vld [vmem:[#allocation5 + $0xf0] sm:$0xff]
    %v553 = vld [vmem:[#allocation5 + $0xf8] sm:$0xff]
    %v554 = vld [vmem:[#allocation5 + $0x100] sm:$0xff]
    %v555 = vld [vmem:[#allocation5 + $0x108] sm:$0xff]
    %v556 = vld [vmem:[#allocation5 + $0x110] sm:$0xff]
    %v557 = vld [vmem:[#allocation5 + $0x118] sm:$0xff]
    %v558 = vld [vmem:[#allocation5 + $0x120] sm:$0xff]
    %v559 = vld [vmem:[#allocation5 + $0x128] sm:$0xff]
    %v560 = vld [vmem:[#allocation5 + $0x130] sm:$0xff]
    %v561 = vld [vmem:[#allocation5 + $0x138] sm:$0xff]
    %v562 = vld [vmem:[#allocation5 + $0x140] sm:$0xff]
    %v563 = vld [vmem:[#allocation5 + $0x148] sm:$0xff]
    %v564 = vld [vmem:[#allocation5 + $0x150] sm:$0xff]
    %v565 = vld [vmem:[#allocation5 + $0x158] sm:$0xff]
    %v566 = vld [vmem:[#allocation5 + $0x160] sm:$0xff]
    %v567 = vld [vmem:[#allocation5 + $0x168] sm:$0xff]
    %v568 = vld [vmem:[#allocation5 + $0x170] sm:$0xff]
    %v569 = vld [vmem:[#allocation5 + $0x178] sm:$0xff]
    %570 = vmatpush.msra.mxu0 %v537
    %571 = vmatpush.msra.mxu0 %v536
    %572 = vmatpush.msra.mxu0 %v535
    %573 = vmatpush.msra.mxu0 %v534
    %574 = vmatpush.msra.mxu0 %v533
    %575 = vmatpush.msra.mxu0 %v532
    %576 = vmatpush.msra.mxu0 %v531
    %577 = vmatpush.msra.mxu0 %v530
    %578 = vmatpush.msra.mxu0 %v529
    %579 = vmatpush.msra.mxu0 %v528
    %580 = vmatpush.msra.mxu0 %v527
    %581 = vmatpush.msra.mxu0 %v526
    %582 = vmatpush.msra.mxu0 %v525
    %583 = vmatpush.msra.mxu0 %v524
    %584 = vmatpush.msra.mxu0 %v523
    %585 = vmatpush.msra.mxu0 %v522
    %586 = vmatmul.f32.gmra.mxu0 %v506
    %v587 = vpop.f32.mrf.mxu0
    %v588 = vadd.f32 0.0, %v587
    %589 = vmatmul.f32.gmra.mxu0 %v507
    %v590 = vpop.f32.mrf.mxu0
    %v591 = vadd.f32 0.0, %v590
    %592 = vmatmul.f32.gmra.mxu0 %v508
    %v593 = vpop.f32.mrf.mxu0
    %v594 = vadd.f32 0.0, %v593
    %595 = vmatmul.f32.gmra.mxu0 %v509
    %v596 = vpop.f32.mrf.mxu0
    %v597 = vadd.f32 0.0, %v596
    %598 = vdwg.mxu0
    %599 = vmatpush.msra.mxu0 %v553
    %600 = vmatpush.msra.mxu0 %v552
    %601 = vmatpush.msra.mxu0 %v551
    %602 = vmatpush.msra.mxu0 %v550
    %603 = vmatpush.msra.mxu0 %v549
    %604 = vmatpush.msra.mxu0 %v548
    %605 = vmatpush.msra.mxu0 %v547
    %606 = vmatpush.msra.mxu0 %v546
    %607 = vmatpush.msra.mxu0 %v545
    %608 = vmatpush.msra.mxu0 %v544
    %609 = vmatpush.msra.mxu0 %v543
    %610 = vmatpush.msra.mxu0 %v542
    %611 = vmatpush.msra.mxu0 %v541
    %612 = vmatpush.msra.mxu0 %v540
    %613 = vmatpush.msra.mxu0 %v539
    %614 = vmatpush.msra.mxu0 %v538
    %615 = vmatmul.f32.gmra.mxu0 %v494
    %v616 = vpop.f32.mrf.mxu0
    %v617 = vadd.f32 %v588, %v616
    %618 = vmatmul.f32.gmra.mxu0 %v495
    %v619 = vpop.f32.mrf.mxu0
    %v620 = vadd.f32 %v591, %v619
    %621 = vmatmul.f32.gmra.mxu0 %v496
    %v622 = vpop.f32.mrf.mxu0
    %v623 = vadd.f32 %v594, %v622
    %624 = vmatmul.f32.gmra.mxu0 %v497
    %v625 = vpop.f32.mrf.mxu0
    %v626 = vadd.f32 %v597, %v625
    %627 = vdwg.mxu0
    %628 = vmatpush.msra.mxu0 %v569
    %629 = vmatpush.msra.mxu0 %v568
    %630 = vmatpush.msra.mxu0 %v567
    %631 = vmatpush.msra.mxu0 %v566
    %632 = vmatpush.msra.mxu0 %v565
    %633 = vmatpush.msra.mxu0 %v564
    %634 = vmatpush.msra.mxu0 %v563
    %635 = vmatpush.msra.mxu0 %v562
    %636 = vmatpush.msra.mxu0 %v561
    %637 = vmatpush.msra.mxu0 %v560
    %638 = vmatpush.msra.mxu0 %v559
    %639 = vmatpush.msra.mxu0 %v558
    %640 = vmatpush.msra.mxu0 %v557
    %641 = vmatpush.msra.mxu0 %v556
    %642 = vmatpush.msra.mxu0 %v555
    %643 = vmatpush.msra.mxu0 %v554
    %644 = vmatmul.f32.gmra.mxu0 %v518
    %v645 = vpop.f32.mrf.mxu0
    %v646 = vadd.f32 %v617, %v645
    %647 = vmatmul.f32.gmra.mxu0 %v519
    %v648 = vpop.f32.mrf.mxu0
    %v649 = vadd.f32 %v620, %v648
    %650 = vmatmul.f32.gmra.mxu0 %v520
    %v651 = vpop.f32.mrf.mxu0
    %v652 = vadd.f32 %v623, %v651
    %653 = vmatmul.f32.gmra.mxu0 %v521
    %v654 = vpop.f32.mrf.mxu0
    %v655 = vadd.f32 %v626, %v654
    %656 = vdwg.mxu0
    %v657 = vld [vmem:[%s8] sm:$0x1]
    %v658 = vld [vmem:[%s9] sm:$0x1]
    %v659 = vadd.f32 %v646, %v649
    %v660 = vadd.f32 %v659, %v652
    %v661 = vadd.f32 %v660, %v655
    %v662 = vrot.slane %v661, 4
    %v663 = vadd.f32 %v661, %v662
    %v664 = vrot.slane %v663, 2
    %v665 = vadd.f32 %v663, %v664
    %v666 = vrot.slane %v665, 1
    %v667 = vadd.f32 %v665, %v666
    %v668 = vmul.f32 %v646, %v646
    %v669 = vmul.f32 %v649, %v649
    %v670 = vmul.f32 %v652, %v652
    %v671 = vmul.f32 %v655, %v655
    %v672 = vadd.f32 %v668, %v669
    %v673 = vadd.f32 %v672, %v670
    %v674 = vadd.f32 %v673, %v671
    %v675 = vrot.slane %v674, 4
    %v676 = vadd.f32 %v674, %v675
    %v677 = vrot.slane %v676, 2
    %v678 = vadd.f32 %v676, %v677
    %v679 = vrot.slane %v678, 1
    %v680 = vadd.f32 %v678, %v679
    %681 = vmatpush.msra.mxu0 %v117
    %682 = vmatpush.msra.mxu0 %v115
    %683 = vmatpush.msra.mxu0 %v113
    %684 = vmatpush.msra.mxu0 %v111
    %685 = vmatpush.msra.mxu0 %v109
    %686 = vmatpush.msra.mxu0 %v107
    %687 = vmatpush.msra.mxu0 %v105
    %688 = vmatpush.msra.mxu0 %v103
    %689 = vmatpush.msra.mxu0 %v101
    %690 = vmatpush.msra.mxu0 %v99
    %691 = vmatpush.msra.mxu0 %v97
    %692 = vmatpush.msra.mxu0 %v95
    %693 = vmatpush.msra.mxu0 %v93
    %694 = vmatpush.msra.mxu0 %v91
    %695 = vmatpush.msra.mxu0 %v89
    %696 = vmatpush.msra.mxu0 %v87
    %697 = vmatmul.f32.gmra.mxu0 %v667
    %v698 = vpop.f32.mrf.mxu0
    %v699 = vadd.f32 0.0, %v698
    %700 = vdwg.mxu0
    %701 = vmatpush.msra.mxu0 %v149
    %702 = vmatpush.msra.mxu0 %v147
    %703 = vmatpush.msra.mxu0 %v145
    %704 = vmatpush.msra.mxu0 %v143
    %705 = vmatpush.msra.mxu0 %v141
    %706 = vmatpush.msra.mxu0 %v139
    %707 = vmatpush.msra.mxu0 %v137
    %708 = vmatpush.msra.mxu0 %v135
    %709 = vmatpush.msra.mxu0 %v133
    %710 = vmatpush.msra.mxu0 %v131
    %711 = vmatpush.msra.mxu0 %v129
    %712 = vmatpush.msra.mxu0 %v127
    %713 = vmatpush.msra.mxu0 %v125
    %714 = vmatpush.msra.mxu0 %v123
    %715 = vmatpush.msra.mxu0 %v121
    %716 = vmatpush.msra.mxu0 %v119
    %717 = vmatmul.f32.gmra.mxu0 %v680
    %v718 = vpop.f32.mrf.mxu0
    %v719 = vadd.f32 %v699, %v718
    %720 = vdwg.mxu0
    %721 = vmatpush.msra.mxu0 %v118
    %722 = vmatpush.msra.mxu0 %v116
    %723 = vmatpush.msra.mxu0 %v114
    %724 = vmatpush.msra.mxu0 %v112
    %725 = vmatpush.msra.mxu0 %v110
    %726 = vmatpush.msra.mxu0 %v108
    %727 = vmatpush.msra.mxu0 %v106
    %728 = vmatpush.msra.mxu0 %v104
    %729 = vmatpush.msra.mxu0 %v102
    %730 = vmatpush.msra.mxu0 %v100
    %731 = vmatpush.msra.mxu0 %v98
    %732 = vmatpush.msra.mxu0 %v96
    %733 = vmatpush.msra.mxu0 %v94
    %734 = vmatpush.msra.mxu0 %v92
    %735 = vmatpush.msra.mxu0 %v90
    %736 = vmatpush.msra.mxu0 %v88
    %737 = vmatmul.f32.gmra.mxu0 %v667
    %v738 = vpop.f32.mrf.mxu0
    %v739 = vadd.f32 0.0, %v738
    %740 = vdwg.mxu0
    %741 = vmatpush.msra.mxu0 %v150
    %742 = vmatpush.msra.mxu0 %v148
    %743 = vmatpush.msra.mxu0 %v146
    %744 = vmatpush.msra.mxu0 %v144
    %745 = vmatpush.msra.mxu0 %v142
    %746 = vmatpush.msra.mxu0 %v140
    %747 = vmatpush.msra.mxu0 %v138
    %748 = vmatpush.msra.mxu0 %v136
    %749 = vmatpush.msra.mxu0 %v134
    %750 = vmatpush.msra.mxu0 %v132
    %751 = vmatpush.msra.mxu0 %v130
    %752 = vmatpush.msra.mxu0 %v128
    %753 = vmatpush.msra.mxu0 %v126
    %754 = vmatpush.msra.mxu0 %v124
    %755 = vmatpush.msra.mxu0 %v122
    %756 = vmatpush.msra.mxu0 %v120
    %757 = vmatmul.f32.gmra.mxu0 %v680
    %v758 = vpop.f32.mrf.mxu0
    %v759 = vadd.f32 %v739, %v758
    %760 = vdwg.mxu0
    %v761 = vmul.f32 %v719, %v719
    %v762 = vsub.f32 %v759, %v761
    %v763 = vadd.f32 %v762, 1e-05
    %v764 = vrsqrt.pop %v763
    %v765 = vmul.f32 %v764, %v763
    %v766 = vmul.f32 %v765, %v764
    %v767 = vmul.f32 0.5, %v766
    %v768 = vsub.f32 1.5, %v767
    %v769 = vmul.f32 %v764, %v768
    %vm770 = vweird.f32 %v763
    %vm771 = vweird.f32 %v764
    %vm772 = vmor %vm770, %vm771
    %v773 = vsel %vm772, %v764, %v769
    %v774 = vmul.f32 %v773, %v657
    %v775 = vmul.f32 %v719, %v774
    %v776 = vsub.f32 %v658, %v775
    %v777 = vperm.slane %v774, 0
    %v778 = vmul.f32 %v646, %v777
    %v779 = vmul.f32 %v649, %v777
    %v780 = vmul.f32 %v652, %v777
    %v781 = vmul.f32 %v655, %v777
    %v783 = vperm.slane %v776, 0
    %v785 = vadd.f32 %v778, %v783
    %v786 = vadd.f32 %v779, %v783
    %v787 = vadd.f32 %v780, %v783
    %v788 = vadd.f32 %v781, %v783
    %v789 = vadd.f32 %v785, %v83
    %v790 = vadd.f32 %v786, %v84
    %v791 = vadd.f32 %v787, %v85
    %v792 = vadd.f32 %v788, %v86
    %v793 = vmax.f32 %v789, 0.0
    %v794 = vmax.f32 %v790, 0.0
    %v795 = vmax.f32 %v791, 0.0
    %v796 = vmax.f32 %v792, 0.0
    %797 = vst [vmem:[#allocation8] sm:$0xff] %v793
    %798 = vst [vmem:[#allocation8 + $0x8] sm:$0xff] %v794
    %799 = vst [vmem:[#allocation8 + $0x10] sm:$0xff] %v795
    %800 = vst [vmem:[#allocation8 + $0x18] sm:$0xff] %v796
    // Predicated region
    $region54: #{tpu_custom_call.1} parent=1 // pred_check
      _
    $region55: #{tpu_custom_call.1} parent=1 // pred_check_branch
      %802 = sbr.rel (0) target = $region57
    $region56: #{tpu_custom_call.1} parent=1 // pred_region
      %804 = vsyncadd [#allocation4], 0
      %s805 = sshll.u32 [#allocation8], 4
      %s806 = int_to_ptr.vmem [resolvable:$true] %s805
      %s807 = sshll.u32 %s10, 4
      %s808 = int_to_ptr.hbm [resolvable:$true] %s807
      %813 = dma.vmem_to_hbm [thread:$0]  %s806, 512, %s808, [#allocation4], 128, 128, 8
    $region57: #{tpu_custom_call.1} parent=1 // pred_fallthru
      _
    // Predicated region
    $region58: #{tpu_custom_call.1} parent=1 // pred_check
      _
    $region59: #{tpu_custom_call.1} parent=1 // pred_check_branch
      %815 = sbr.rel (0) target = $region61
    $region60: #{tpu_custom_call.1} parent=1 // pred_region
      %817 = dma.done [#allocation4], 512
    $region61: #{tpu_custom_call.1} parent=1 // pred_fallthru
      _
    %818 = vsyncpa [#allocation3], 1
    %819 = vsyncpa [#allocation6], 1
    %820 = vsyncpa [#allocation4], 1

</llo_original>
